<compile_context>
chip_gen: v7x
topology: tpu7x:2x2x1
jax: 0.10.0
libtpu: 0.0.40
codegen_flags: <defaults>
</compile_context>

<pallas_src>
import jax
import jax.numpy as jnp
from jax.experimental import pallas as pl
from jax.experimental.pallas import tpu as pltpu

_LANE = 128
_SUBLANE = 8


def _round_up(x, m):
    return ((x + m - 1) // m) * m


def _make_rnn_kernel(seq_len, batch_pad, hidden_pad, vocab_pad, unroll):
    n_rows = seq_len * batch_pad

    def kernel(ids_ref, emb_proj_ref, whh_ref, wfc_ref, bfc_ref,
               out_ref, xp_ref):
        # (1) Fused embedding lookup + input projection, hoisted out of the
        #     recurrence: one-hot(token) @ (emb_table @ W_ih^T + b_ih + b_hh)
        #     as ONE lane-dense MXU matmul over the whole sequence.
        ids = ids_ref[...]                                         # (N, 1) i32
        vocab_iota = jax.lax.broadcasted_iota(
            jnp.int32, (n_rows, vocab_pad), 1)
        onehot = jnp.where(vocab_iota == ids, 1.0, 0.0).astype(jnp.float32)
        xp_ref[...] = jnp.dot(onehot, emb_proj_ref[...],
                              preferred_element_type=jnp.float32)

        # (2) Serial recurrence: per-step critical path is one small matmul
        #     (h @ W_hh^T), one add, one EUP tanh.  W_hh loaded once.
        whh = whh_ref[...]                                  # (Hpad, Hpad) f32
        h0 = jnp.zeros((batch_pad, hidden_pad), jnp.float32)

        def step(t, h):
            # batch_pad % 8 == 0  =>  aligned whole-sublane-tile load.
            start = pl.multiple_of(t * batch_pad, batch_pad)
            x_t = xp_ref[pl.ds(start, batch_pad), :]        # (Bpad, Hpad)
            return jnp.tanh(
                x_t + jnp.dot(h, whh, preferred_element_type=jnp.float32))

        h_last = jax.lax.fori_loop(0, seq_len, step, h0, unroll=unroll)

        # (3) Final FC on the last hidden state; output lanes padded to 128
        #     so this is an unmasked, lane-dense store.
        out_ref[...] = (
            jnp.dot(h_last, wfc_ref[...], preferred_element_type=jnp.float32)
            + bfc_ref[...]).astype(out_ref.dtype)

    return kernel


def prepare_rnn_params(emb_table, w_ih, w_hh, b_ih, b_hh, w_fc, b_fc):
    """Per-model, call-ONCE constant preprocessing (hoisted out of the forward).

    Returns lane-dense, zero-padded, pre-transposed operands for the kernel.
    """
    vocab, _ = emb_table.shape
    hidden = w_hh.shape[0]
    out_dim = w_fc.shape[0]
    vocab_pad = _round_up(vocab, _LANE)
    hidden_pad = _round_up(hidden, _LANE)
    out_pad = _round_up(out_dim, _LANE)

    # Fuse embedding with the input projection and fold both RNN biases:
    #   emb_proj[v] = emb_table[v] @ W_ih^T + b_ih + b_hh
    emb_proj = (emb_table.astype(jnp.float32) @ w_ih.T.astype(jnp.float32)
                + (b_ih + b_hh).astype(jnp.float32))               # (V, H)

    emb_proj_pad = jnp.zeros((vocab_pad, hidden_pad), jnp.float32)
    emb_proj_pad = emb_proj_pad.at[:vocab, :hidden].set(emb_proj)

    whh_pad = jnp.zeros((hidden_pad, hidden_pad), jnp.float32)
    whh_pad = whh_pad.at[:hidden, :hidden].set(w_hh.T.astype(jnp.float32))

    wfc_pad = jnp.zeros((hidden_pad, out_pad), jnp.float32)
    wfc_pad = wfc_pad.at[:hidden, :out_dim].set(w_fc.T.astype(jnp.float32))

    bfc_pad = jnp.zeros((1, out_pad), jnp.float32)
    bfc_pad = bfc_pad.at[:, :out_dim].set(
        b_fc.reshape(1, out_dim).astype(jnp.float32))

    return {
        "emb_proj": emb_proj_pad,   # (vocab_pad, hidden_pad)
        "whh": whh_pad,             # (hidden_pad, hidden_pad)
        "wfc": wfc_pad,             # (hidden_pad, out_pad)
        "bfc": bfc_pad,             # (1, out_pad)
        "out_dim": out_dim,
        "vocab": vocab,
    }


def rnn_forward(text, params):
    """text: [seq, batch] int32 token ids.  Returns [batch, output_dim] f32."""
    seq_len, batch = text.shape
    batch_pad = _round_up(batch, _SUBLANE)
    vocab_pad, hidden_pad = params["emb_proj"].shape
    out_pad = params["wfc"].shape[1]
    out_dim = params["out_dim"]

    # Only per-call glue: pad batch to a multiple of 8 (pad tokens = id 0,
    # their rows are computed independently and sliced away) and flatten.
    ids = jnp.zeros((seq_len, batch_pad), jnp.int32)
    ids = ids.at[:, :batch].set(text.astype(jnp.int32))
    ids = ids.reshape(seq_len * batch_pad, 1)

    unroll = True if seq_len <= 32 else 8
    vmem_spec = pl.BlockSpec(memory_space=pltpu.MemorySpace.VMEM)

    out_padded = pl.pallas_call(
        _make_rnn_kernel(seq_len, batch_pad, hidden_pad, vocab_pad, unroll),
        out_shape=jax.ShapeDtypeStruct((batch_pad, out_pad), jnp.float32),
        in_specs=[vmem_spec] * 5,
        out_specs=vmem_spec,
        scratch_shapes=[
            pltpu.VMEM((seq_len * batch_pad, hidden_pad), jnp.float32)],
    )(ids, params["emb_proj"], params["whh"], params["wfc"], params["bfc"])

    return out_padded[:batch, :out_dim]


def rnn_forward_ref(text, emb_table, w_ih, w_hh, b_ih, b_hh, w_fc, b_fc):
    """Pure-JAX reference mirroring the PyTorch forward."""
    x = jnp.take(emb_table, text, axis=0).astype(jnp.float32)  # (seq, B, emb)
    batch = text.shape[1]
    hidden_dim = w_hh.shape[0]
    h = jnp.zeros((batch, hidden_dim), jnp.float32)

    def step(h, x_t):
        h_new = jnp.tanh(x_t @ w_ih.T + b_ih + h @ w_hh.T + b_hh)
        return h_new, None

    h_last, _ = jax.lax.scan(step, h, x)
    return h_last @ w_fc.T + b_fc


if __name__ == "__main__":
    # Small shapes consistent with the module's forward.
    vocab_size = 50      # input_dim
    emb_dim = 32         # embedding_dim
    hidden_dim = 32      # hidden_dim
    out_dim = 1          # output_dim (binary classification; .squeeze(1))
    seq_len = 8
    batch = 8

    key = jax.random.PRNGKey(0)
    k_txt, k_emb, k_wih, k_whh, k_bih, k_bhh, k_wfc, k_bfc = jax.random.split(key, 8)

    text = jax.random.randint(k_txt, (seq_len, batch), 0, vocab_size, dtype=jnp.int32)

    emb_table = jax.random.normal(k_emb, (vocab_size, emb_dim), jnp.float32) * 0.1
    scale_h = 1.0 / jnp.sqrt(hidden_dim)
    w_ih = jax.random.uniform(k_wih, (hidden_dim, emb_dim), jnp.float32, -scale_h, scale_h)
    w_hh = jax.random.uniform(k_whh, (hidden_dim, hidden_dim), jnp.float32, -scale_h, scale_h)
    b_ih = jax.random.uniform(k_bih, (hidden_dim,), jnp.float32, -scale_h, scale_h)
    b_hh = jax.random.uniform(k_bhh, (hidden_dim,), jnp.float32, -scale_h, scale_h)
    w_fc = jax.random.uniform(k_wfc, (out_dim, hidden_dim), jnp.float32, -scale_h, scale_h)
    b_fc = jax.random.uniform(k_bfc, (out_dim,), jnp.float32, -scale_h, scale_h)

    # Per-model constant preprocessing (done once, not per call).
    params = jax.tree_util.tree_map(jax.block_until_ready,
                                    prepare_rnn_params(emb_table, w_ih, w_hh,
                                                       b_ih, b_hh, w_fc, b_fc))

    out = rnn_forward(text, params)
    out = jax.block_until_ready(out)

    ref = rnn_forward_ref(text, emb_table, w_ih, w_hh, b_ih, b_hh, w_fc, b_fc)
    assert out.shape == (batch, out_dim)
    assert jnp.allclose(out, ref, atol=1e-5, rtol=1e-5), (out, ref)

    print("KERNEL_OK")
</pallas_src>

<mosaic_0001>
module attributes {stable_mosaic.version = 11 : i64} {
  func.func @kernel(%arg0: memref<64x1xi32, #tpu.memory_space<vmem>>, %arg1: memref<128x128xf32, #tpu.memory_space<vmem>>, %arg2: memref<128x128xf32, #tpu.memory_space<vmem>>, %arg3: memref<128x128xf32, #tpu.memory_space<vmem>>, %arg4: memref<1x128xf32, #tpu.memory_space<vmem>>, %arg5: memref<8x128xf32, #tpu.memory_space<vmem>>, %arg6: memref<64x128xf32, #tpu.memory_space<vmem>>) attributes {dimension_semantics = [], scalar_prefetch = 0 : i64, scratch_operands = 1 : i64, tpu.core_type = #tpu.core_type<tc>} {
    %c0 = arith.constant 0 : index
    %c0_0 = arith.constant 0 : index
    %0 = vector.load %arg0[%c0, %c0_0] : memref<64x1xi32, #tpu.memory_space<vmem>>, vector<64x1xi32>
    %1 = tpu.iota {dimensions = array<i32: 1>} : vector<64x128xi32>
    %2 = vector.broadcast %0 : vector<64x1xi32> to vector<64x128xi32>
    %3 = arith.cmpi eq, %1, %2 : vector<64x128xi32>
    %cst = arith.constant 1.000000e+00 : f32
    %cst_1 = arith.constant 0.000000e+00 : f32
    %4 = vector.broadcast %cst : f32 to vector<64x128xf32>
    %5 = vector.broadcast %cst_1 : f32 to vector<64x128xf32>
    %6 = arith.select %3, %4, %5 : vector<64x128xi1>, vector<64x128xf32>
    %c0_2 = arith.constant 0 : index
    %c0_3 = arith.constant 0 : index
    %7 = vector.load %arg1[%c0_2, %c0_3] : memref<128x128xf32, #tpu.memory_space<vmem>>, vector<128x128xf32>
    %cst_4 = arith.constant dense<0.000000e+00> : vector<64x128xf32>
    %8 = tpu.matmul %6, %7, %cst_4 {dimension_numbers = #tpu.dot_dimension_numbers<[1], [0], [0], [1], [0, 0, 1, 1], [], []>} : vector<64x128xf32>, vector<128x128xf32>, vector<64x128xf32> -> vector<64x128xf32>
    %c0_5 = arith.constant 0 : index
    %c0_6 = arith.constant 0 : index
    %9 = vector.load %arg6[%c0_5, %c0_6] : memref<64x128xf32, #tpu.memory_space<vmem>>, vector<64x128xf32>
    tpu.vector_store %arg6[%c0_5, %c0_6], %8 {strides = array<i32>} : memref<64x128xf32, #tpu.memory_space<vmem>>, vector<64x128xf32>,
    %c0_7 = arith.constant 0 : index
    %c0_8 = arith.constant 0 : index
    %10 = vector.load %arg2[%c0_7, %c0_8] : memref<128x128xf32, #tpu.memory_space<vmem>>, vector<128x128xf32>
    %cst_9 = arith.constant 0.000000e+00 : f32
    %11 = vector.broadcast %cst_9 : f32 to vector<8x128xf32>
    %c0_i32 = arith.constant 0 : i32
    %c8_i32 = arith.constant 8 : i32
    %12 = arith.muli %c0_i32, %c8_i32 : i32
    %13 = tpu.assume_multiple %12, 8 : i32
    %14 = arith.index_cast %13 : i32 to index
    %c0_10 = arith.constant 0 : index
    %15 = vector.load %arg6[%14, %c0_10] : memref<64x128xf32, #tpu.memory_space<vmem>>, vector<8x128xf32>
    %cst_11 = arith.constant dense<0.000000e+00> : vector<8x128xf32>
    %16 = tpu.matmul %11, %10, %cst_11 {dimension_numbers = #tpu.dot_dimension_numbers<[1], [0], [0], [1], [0, 0, 1, 1], [], []>} : vector<8x128xf32>, vector<128x128xf32>, vector<8x128xf32> -> vector<8x128xf32>
    %17 = arith.addf %15, %16 : vector<8x128xf32>
    %18 = math.tanh %17 : vector<8x128xf32>
    %c1_i32 = arith.constant 1 : i32
    %c8_i32_12 = arith.constant 8 : i32
    %19 = arith.muli %c1_i32, %c8_i32_12 : i32
    %20 = tpu.assume_multiple %19, 8 : i32
    %21 = arith.index_cast %20 : i32 to index
    %c0_13 = arith.constant 0 : index
    %22 = vector.load %arg6[%21, %c0_13] : memref<64x128xf32, #tpu.memory_space<vmem>>, vector<8x128xf32>
    %cst_14 = arith.constant dense<0.000000e+00> : vector<8x128xf32>
    %23 = tpu.matmul %18, %10, %cst_14 {dimension_numbers = #tpu.dot_dimension_numbers<[1], [0], [0], [1], [0, 0, 1, 1], [], []>} : vector<8x128xf32>, vector<128x128xf32>, vector<8x128xf32> -> vector<8x128xf32>
    %24 = arith.addf %22, %23 : vector<8x128xf32>
    %25 = math.tanh %24 : vector<8x128xf32>
    %c2_i32 = arith.constant 2 : i32
    %c8_i32_15 = arith.constant 8 : i32
    %26 = arith.muli %c2_i32, %c8_i32_15 : i32
    %27 = tpu.assume_multiple %26, 8 : i32
    %28 = arith.index_cast %27 : i32 to index
    %c0_16 = arith.constant 0 : index
    %29 = vector.load %arg6[%28, %c0_16] : memref<64x128xf32, #tpu.memory_space<vmem>>, vector<8x128xf32>
    %cst_17 = arith.constant dense<0.000000e+00> : vector<8x128xf32>
    %30 = tpu.matmul %25, %10, %cst_17 {dimension_numbers = #tpu.dot_dimension_numbers<[1], [0], [0], [1], [0, 0, 1, 1], [], []>} : vector<8x128xf32>, vector<128x128xf32>, vector<8x128xf32> -> vector<8x128xf32>
    %31 = arith.addf %29, %30 : vector<8x128xf32>
    %32 = math.tanh %31 : vector<8x128xf32>
    %c3_i32 = arith.constant 3 : i32
    %c8_i32_18 = arith.constant 8 : i32
    %33 = arith.muli %c3_i32, %c8_i32_18 : i32
    %34 = tpu.assume_multiple %33, 8 : i32
    %35 = arith.index_cast %34 : i32 to index
    %c0_19 = arith.constant 0 : index
    %36 = vector.load %arg6[%35, %c0_19] : memref<64x128xf32, #tpu.memory_space<vmem>>, vector<8x128xf32>
    %cst_20 = arith.constant dense<0.000000e+00> : vector<8x128xf32>
    %37 = tpu.matmul %32, %10, %cst_20 {dimension_numbers = #tpu.dot_dimension_numbers<[1], [0], [0], [1], [0, 0, 1, 1], [], []>} : vector<8x128xf32>, vector<128x128xf32>, vector<8x128xf32> -> vector<8x128xf32>
    %38 = arith.addf %36, %37 : vector<8x128xf32>
    %39 = math.tanh %38 : vector<8x128xf32>
    %c4_i32 = arith.constant 4 : i32
    %c8_i32_21 = arith.constant 8 : i32
    %40 = arith.muli %c4_i32, %c8_i32_21 : i32
    %41 = tpu.assume_multiple %40, 8 : i32
    %42 = arith.index_cast %41 : i32 to index
    %c0_22 = arith.constant 0 : index
    %43 = vector.load %arg6[%42, %c0_22] : memref<64x128xf32, #tpu.memory_space<vmem>>, vector<8x128xf32>
    %cst_23 = arith.constant dense<0.000000e+00> : vector<8x128xf32>
    %44 = tpu.matmul %39, %10, %cst_23 {dimension_numbers = #tpu.dot_dimension_numbers<[1], [0], [0], [1], [0, 0, 1, 1], [], []>} : vector<8x128xf32>, vector<128x128xf32>, vector<8x128xf32> -> vector<8x128xf32>
    %45 = arith.addf %43, %44 : vector<8x128xf32>
    %46 = math.tanh %45 : vector<8x128xf32>
    %c5_i32 = arith.constant 5 : i32
    %c8_i32_24 = arith.constant 8 : i32
    %47 = arith.muli %c5_i32, %c8_i32_24 : i32
    %48 = tpu.assume_multiple %47, 8 : i32
    %49 = arith.index_cast %48 : i32 to index
    %c0_25 = arith.constant 0 : index
    %50 = vector.load %arg6[%49, %c0_25] : memref<64x128xf32, #tpu.memory_space<vmem>>, vector<8x128xf32>
    %cst_26 = arith.constant dense<0.000000e+00> : vector<8x128xf32>
    %51 = tpu.matmul %46, %10, %cst_26 {dimension_numbers = #tpu.dot_dimension_numbers<[1], [0], [0], [1], [0, 0, 1, 1], [], []>} : vector<8x128xf32>, vector<128x128xf32>, vector<8x128xf32> -> vector<8x128xf32>
    %52 = arith.addf %50, %51 : vector<8x128xf32>
    %53 = math.tanh %52 : vector<8x128xf32>
    %c6_i32 = arith.constant 6 : i32
    %c8_i32_27 = arith.constant 8 : i32
    %54 = arith.muli %c6_i32, %c8_i32_27 : i32
    %55 = tpu.assume_multiple %54, 8 : i32
    %56 = arith.index_cast %55 : i32 to index
    %c0_28 = arith.constant 0 : index
    %57 = vector.load %arg6[%56, %c0_28] : memref<64x128xf32, #tpu.memory_space<vmem>>, vector<8x128xf32>
    %cst_29 = arith.constant dense<0.000000e+00> : vector<8x128xf32>
    %58 = tpu.matmul %53, %10, %cst_29 {dimension_numbers = #tpu.dot_dimension_numbers<[1], [0], [0], [1], [0, 0, 1, 1], [], []>} : vector<8x128xf32>, vector<128x128xf32>, vector<8x128xf32> -> vector<8x128xf32>
    %59 = arith.addf %57, %58 : vector<8x128xf32>
    %60 = math.tanh %59 : vector<8x128xf32>
    %c7_i32 = arith.constant 7 : i32
    %c8_i32_30 = arith.constant 8 : i32
    %61 = arith.muli %c7_i32, %c8_i32_30 : i32
    %62 = tpu.assume_multiple %61, 8 : i32
    %63 = arith.index_cast %62 : i32 to index
    %c0_31 = arith.constant 0 : index
    %64 = vector.load %arg6[%63, %c0_31] : memref<64x128xf32, #tpu.memory_space<vmem>>, vector<8x128xf32>
    %cst_32 = arith.constant dense<0.000000e+00> : vector<8x128xf32>
    %65 = tpu.matmul %60, %10, %cst_32 {dimension_numbers = #tpu.dot_dimension_numbers<[1], [0], [0], [1], [0, 0, 1, 1], [], []>} : vector<8x128xf32>, vector<128x128xf32>, vector<8x128xf32> -> vector<8x128xf32>
    %66 = arith.addf %64, %65 : vector<8x128xf32>
    %67 = math.tanh %66 : vector<8x128xf32>
    %c8_i32_33 = arith.constant 8 : i32
    %c0_34 = arith.constant 0 : index
    %c0_35 = arith.constant 0 : index
    %68 = vector.load %arg3[%c0_34, %c0_35] : memref<128x128xf32, #tpu.memory_space<vmem>>, vector<128x128xf32>
    %cst_36 = arith.constant dense<0.000000e+00> : vector<8x128xf32>
    %69 = tpu.matmul %67, %68, %cst_36 {dimension_numbers = #tpu.dot_dimension_numbers<[1], [0], [0], [1], [0, 0, 1, 1], [], []>} : vector<8x128xf32>, vector<128x128xf32>, vector<8x128xf32> -> vector<8x128xf32>
    %c0_37 = arith.constant 0 : index
    %c0_38 = arith.constant 0 : index
    %70 = vector.load %arg4[%c0_37, %c0_38] : memref<1x128xf32, #tpu.memory_space<vmem>>, vector<1x128xf32>
    %71 = vector.broadcast %70 : vector<1x128xf32> to vector<8x128xf32>
    %72 = arith.addf %69, %71 : vector<8x128xf32>
    %c0_39 = arith.constant 0 : index
    %c0_40 = arith.constant 0 : index
    %73 = vector.load %arg5[%c0_39, %c0_40] : memref<8x128xf32, #tpu.memory_space<vmem>>, vector<8x128xf32>
    tpu.vector_store %arg5[%c0_39, %c0_40], %72 {strides = array<i32>} : memref<8x128xf32, #tpu.memory_space<vmem>>, vector<8x128xf32>,
    return
  }
}

</mosaic_0001>

<llo_original>
// kernel: tpu_custom_call.1
$region0: #{tpu_custom_call.1}
  #allocation0 [shape = 'u32[]', space=smem, size = 0x4, offset = 0x4, fixed_abs, tag = 'smem constant byte address 0x4 - core index']
  #allocation1 [shape = 'u32[144,128]{1,0:T(1,128)}', space=vmem, size = 0x12000, scoped, tag = 'internal scratch']
  #allocation2 [shape = 'f32[64,128]{1,0:T(8,128)}', space=vmem, size = 0x8000, scoped, tag = 'scratch operand']
  %s0 = inlined_call_operand.vmem [shape: s32[64,1], index: 0, kind: input, shape index: {}]
  %s1 = inlined_call_operand.hbm [shape: f32[128,128], index: 1, kind: input, shape index: {}]
  %s2 = inlined_call_operand.hbm [shape: f32[128,128], index: 2, kind: input, shape index: {}]
  %s3 = inlined_call_operand.hbm [shape: f32[128,128], index: 3, kind: input, shape index: {}]
  %s4 = inlined_call_operand.vmem [shape: f32[1,128], index: 4, kind: input, shape index: {}]
  %s5 = inlined_call_operand.hbm [shape: f32[8,128], index: 5, kind: output, shape index: {}]
  %s6 = sld [smem:[#allocation0]]
  $region42: #{tpu_custom_call.1} parent=0
    _
  %s8 = ssub.s32 1, %s6
  %s9 = scalar_select 0, %s8, %s6
  $region1: #{tpu_custom_call.1} parent=0
    #allocation3 [shape = 'u8[65536]{0}', space=vmem, size = 0x10000, scoped, tag = 'input window, operand 1, single buffered']
    #allocation4 [shape = 's32[1]{0}', space=sflag, size = 0x4, scoped, tag = 'scoped memory for tpu_custom_call.1']
    #allocation5 [shape = 's32[1]{0}', space=sflag, size = 0x4, scoped, tag = 'scoped memory for tpu_custom_call.1']
    #allocation6 [shape = 'u8[65536]{0}', space=vmem, size = 0x10000, scoped, tag = 'input window, operand 2, single buffered']
    #allocation7 [shape = 's32[1]{0}', space=sflag, size = 0x4, scoped, tag = 'scoped memory for tpu_custom_call.1']
    #allocation8 [shape = 'u8[65536]{0}', space=vmem, size = 0x10000, scoped, tag = 'input window, operand 3, single buffered']
    #allocation9 [shape = 'u8[4096]{0}', space=vmem, size = 0x1000, scoped, tag = 'output window, operand 0, single buffered']
    %10 = vsyncpa [#allocation4], 0
    %11 = vsyncpa [#allocation7], 0
    %12 = vsyncpa [#allocation5], 0
    // Predicated region
    $region2: #{tpu_custom_call.1} parent=1 // pred_check
      _
    $region3: #{tpu_custom_call.1} parent=1 // pred_check_branch
      %14 = sbr.rel (0) target = $region5
    $region4: #{tpu_custom_call.1} parent=1 // pred_region
      _
    $region5: #{tpu_custom_call.1} parent=1 // pred_fallthru
      _
    // Predicated region
    $region6: #{tpu_custom_call.1} parent=1 // pred_check
      _
    $region7: #{tpu_custom_call.1} parent=1 // pred_check_branch
      %16 = sbr.rel (0) target = $region9
    $region8: #{tpu_custom_call.1} parent=1 // pred_region
      %s18 = ssub.s32 2048, 2048
      %19 = vsyncadd [#allocation4], %s18
      %s20 = sshll.u32 [#allocation3], 4
      %s21 = int_to_ptr.vmem [resolvable:$true] %s20
      %26 = dma.hbm_to_vmem [thread:$0]  %s1, 2048, %s21, [#allocation4], 128, 128, 8
    $region9: #{tpu_custom_call.1} parent=1 // pred_fallthru
      _
    // Predicated region
    $region10: #{tpu_custom_call.1} parent=1 // pred_check
      _
    $region11: #{tpu_custom_call.1} parent=1 // pred_check_branch
      %28 = sbr.rel (0) target = $region13
    $region12: #{tpu_custom_call.1} parent=1 // pred_region
      %s30 = ssub.s32 2048, 2048
      %31 = vsyncadd [#allocation7], %s30
      %s32 = sshll.u32 [#allocation6], 4
      %s33 = int_to_ptr.vmem [resolvable:$true] %s32
      %38 = dma.hbm_to_vmem [thread:$0]  %s2, 2048, %s33, [#allocation7], 128, 128, 8
    $region13: #{tpu_custom_call.1} parent=1 // pred_fallthru
      _
    // Predicated region
    $region14: #{tpu_custom_call.1} parent=1 // pred_check
      _
    $region15: #{tpu_custom_call.1} parent=1 // pred_check_branch
      %40 = sbr.rel (0) target = $region17
    $region16: #{tpu_custom_call.1} parent=1 // pred_region
      %s42 = ssub.s32 2048, 2048
      %43 = vsyncadd [#allocation7], %s42
      %s44 = sshll.u32 [#allocation8], 4
      %s45 = int_to_ptr.vmem [resolvable:$true] %s44
      %50 = dma.hbm_to_vmem [thread:$0]  %s3, 2048, %s45, [#allocation7], 128, 128, 8
    $region17: #{tpu_custom_call.1} parent=1 // pred_fallthru
      _
    // Predicated region
    $region18: #{tpu_custom_call.1} parent=1 // pred_check
      _
    $region19: #{tpu_custom_call.1} parent=1 // pred_check_branch
      %52 = sbr.rel (0) target = $region21
    $region20: #{tpu_custom_call.1} parent=1 // pred_region
      _
    $region21: #{tpu_custom_call.1} parent=1 // pred_fallthru
      _
    // Predicated region
    $region22: #{tpu_custom_call.1} parent=1 // pred_check
      _
    $region23: #{tpu_custom_call.1} parent=1 // pred_check_branch
      %54 = sbr.rel (0) target = $region25
    $region24: #{tpu_custom_call.1} parent=1 // pred_region
      %55 = dma.done [#allocation4], 2048
    $region25: #{tpu_custom_call.1} parent=1 // pred_fallthru
      _
    // Predicated region
    $region26: #{tpu_custom_call.1} parent=1 // pred_check
      _
    $region27: #{tpu_custom_call.1} parent=1 // pred_check_branch
      %57 = sbr.rel (0) target = $region29
    $region28: #{tpu_custom_call.1} parent=1 // pred_region
      %58 = dma.done [#allocation7], 2048
    $region29: #{tpu_custom_call.1} parent=1 // pred_fallthru
      _
    // Predicated region
    $region30: #{tpu_custom_call.1} parent=1 // pred_check
      _
    $region31: #{tpu_custom_call.1} parent=1 // pred_check_branch
      %60 = sbr.rel (0) target = $region33
    $region32: #{tpu_custom_call.1} parent=1 // pred_region
      %61 = dma.done [#allocation7], 2048
    $region33: #{tpu_custom_call.1} parent=1 // pred_fallthru
      _
    %v62 = vld [vmem:[%s0] sm:$0xff]
    %v63 = vld [vmem:[%s0 + $0x8] sm:$0xff]
    %v64 = vld [vmem:[%s0 + $0x10] sm:$0xff]
    %v65 = vld [vmem:[%s0 + $0x18] sm:$0xff]
    %v66 = vld [vmem:[%s0 + $0x20] sm:$0xff]
    %v67 = vld [vmem:[%s0 + $0x28] sm:$0xff]
    %v68 = vld [vmem:[%s0 + $0x30] sm:$0xff]
    %v69 = vld [vmem:[%s0 + $0x38] sm:$0xff]
    %v70 = vlaneseq
    %v71 = vand.u32 %v70, 127
    %72 = vset.pattern.permute.xlu0 0
    %73 = vperm.xlu0 %72, %v62
    %v74 = vpop.permute.xlu0 %73
    %75 = vset.pattern.permute.xlu0 0
    %76 = vperm.xlu0 %75, %v63
    %v77 = vpop.permute.xlu0 %76
    %78 = vset.pattern.permute.xlu0 0
    %79 = vperm.xlu0 %78, %v64
    %v80 = vpop.permute.xlu0 %79
    %81 = vset.pattern.permute.xlu0 0
    %82 = vperm.xlu0 %81, %v65
    %v83 = vpop.permute.xlu0 %82
    %84 = vset.pattern.permute.xlu0 0
    %85 = vperm.xlu0 %84, %v66
    %v86 = vpop.permute.xlu0 %85
    %87 = vset.pattern.permute.xlu0 0
    %88 = vperm.xlu0 %87, %v67
    %v89 = vpop.permute.xlu0 %88
    %90 = vset.pattern.permute.xlu0 0
    %91 = vperm.xlu0 %90, %v68
    %v92 = vpop.permute.xlu0 %91
    %93 = vset.pattern.permute.xlu0 0
    %94 = vperm.xlu0 %93, %v69
    %v95 = vpop.permute.xlu0 %94
    %vm96 = vcmp.eq.s32.totalorder %v71, %v74
    %vm97 = vcmp.eq.s32.totalorder %v71, %v77
    %vm98 = vcmp.eq.s32.totalorder %v71, %v80
    %vm99 = vcmp.eq.s32.totalorder %v71, %v83
    %vm100 = vcmp.eq.s32.totalorder %v71, %v86
    %vm101 = vcmp.eq.s32.totalorder %v71, %v89
    %vm102 = vcmp.eq.s32.totalorder %v71, %v92
    %vm103 = vcmp.eq.s32.totalorder %v71, %v95
    %v104 = vsel %vm96, 1.0, 0.0
    %v105 = vsel %vm97, 1.0, 0.0
    %v106 = vsel %vm98, 1.0, 0.0
    %v107 = vsel %vm99, 1.0, 0.0
    %v108 = vsel %vm100, 1.0, 0.0
    %v109 = vsel %vm101, 1.0, 0.0
    %v110 = vsel %vm102, 1.0, 0.0
    %v111 = vsel %vm103, 1.0, 0.0
    %v112 = vld [vmem:[#allocation3] sm:$0xff]
    %v113 = vld [vmem:[#allocation3 + $0x8] sm:$0xff]
    %v114 = vld [vmem:[#allocation3 + $0x10] sm:$0xff]
    %v115 = vld [vmem:[#allocation3 + $0x18] sm:$0xff]
    %v116 = vld [vmem:[#allocation3 + $0x20] sm:$0xff]
    %v117 = vld [vmem:[#allocation3 + $0x28] sm:$0xff]
    %v118 = vld [vmem:[#allocation3 + $0x30] sm:$0xff]
    %v119 = vld [vmem:[#allocation3 + $0x38] sm:$0xff]
    %v120 = vld [vmem:[#allocation3 + $0x40] sm:$0xff]
    %v121 = vld [vmem:[#allocation3 + $0x48] sm:$0xff]
    %v122 = vld [vmem:[#allocation3 + $0x50] sm:$0xff]
    %v123 = vld [vmem:[#allocation3 + $0x58] sm:$0xff]
    %v124 = vld [vmem:[#allocation3 + $0x60] sm:$0xff]
    %v125 = vld [vmem:[#allocation3 + $0x68] sm:$0xff]
    %v126 = vld [vmem:[#allocation3 + $0x70] sm:$0xff]
    %v127 = vld [vmem:[#allocation3 + $0x78] sm:$0xff]
    %128 = vmatprep.subr.mxu0 0.0
    %129 = vmatpush1.msra.mxu0 %v112
    %130 = vmatprep.subr.mxu0 0.0
    %131 = vmatpush1.msra.mxu0 %v113
    %132 = vmatprep.subr.mxu0 0.0
    %133 = vmatpush1.msra.mxu0 %v114
    %134 = vmatprep.subr.mxu0 0.0
    %135 = vmatpush1.msra.mxu0 %v115
    %136 = vmatprep.subr.mxu0 0.0
    %137 = vmatpush1.msra.mxu0 %v116
    %138 = vmatprep.subr.mxu0 0.0
    %139 = vmatpush1.msra.mxu0 %v117
    %140 = vmatprep.subr.mxu0 0.0
    %141 = vmatpush1.msra.mxu0 %v118
    %142 = vmatprep.subr.mxu0 0.0
    %143 = vmatpush1.msra.mxu0 %v119
    %144 = vmatprep.subr.mxu0 0.0
    %145 = vmatpush1.msra.mxu0 %v120
    %146 = vmatprep.subr.mxu0 0.0
    %147 = vmatpush1.msra.mxu0 %v121
    %148 = vmatprep.subr.mxu0 0.0
    %149 = vmatpush1.msra.mxu0 %v122
    %150 = vmatprep.subr.mxu0 0.0
    %151 = vmatpush1.msra.mxu0 %v123
    %152 = vmatprep.subr.mxu0 0.0
    %153 = vmatpush1.msra.mxu0 %v124
    %154 = vmatprep.subr.mxu0 0.0
    %155 = vmatpush1.msra.mxu0 %v125
    %156 = vmatprep.subr.mxu0 0.0
    %157 = vmatpush1.msra.mxu0 %v126
    %158 = vmatprep.subr.mxu0 0.0
    %159 = vmatpush1.msra.mxu0 %v127
    %160 = vmatprep.subr.mxu0 0.0
    %161 = vmatpush1.msra.mxu0 0.0
    %162 = vmatprep.subr.mxu0 0.0
    %163 = vmatpush1.msra.mxu0 0.0
    %164 = vmatprep.subr.mxu0 0.0
    %165 = vmatpush1.msra.mxu0 0.0
    %166 = vmatprep.subr.mxu0 0.0
    %167 = vmatpush1.msra.mxu0 0.0
    %168 = vmatprep.subr.mxu0 0.0
    %169 = vmatpush1.msra.mxu0 0.0
    %170 = vmatprep.subr.mxu0 0.0
    %171 = vmatpush1.msra.mxu0 0.0
    %172 = vmatprep.subr.mxu0 0.0
    %173 = vmatpush1.msra.mxu0 0.0
    %174 = vmatprep.subr.mxu0 0.0
    %175 = vmatpush1.msra.mxu0 0.0
    %176 = vmatprep.subr.mxu0 0.0
    %177 = vmatpush1.msra.mxu0 0.0
    %178 = vmatprep.subr.mxu0 0.0
    %179 = vmatpush1.msra.mxu0 0.0
    %180 = vmatprep.subr.mxu0 0.0
    %181 = vmatpush1.msra.mxu0 0.0
    %182 = vmatprep.subr.mxu0 0.0
    %183 = vmatpush1.msra.mxu0 0.0
    %184 = vmatprep.subr.mxu0 0.0
    %185 = vmatpush1.msra.mxu0 0.0
    %186 = vmatprep.subr.mxu0 0.0
    %187 = vmatpush1.msra.mxu0 0.0
    %188 = vmatprep.subr.mxu0 0.0
    %189 = vmatpush1.msra.mxu0 0.0
    %190 = vmatprep.subr.mxu0 0.0
    %191 = vmatpush1.msra.mxu0 0.0
    %192 = vmatprep.mubr.f32.mxu0 0.0
    %193 = vmatmul.mubr.f32.gmra.mrb[0].mxu0 %v104
    %v194 = vpop.f32.mrb[0].mxu0
    %v195 = vadd.f32 0.0, %v194
    %v196 = vpop.f32.mrb[0].mxu0
    %197 = vmatprep.mubr.f32.mxu0 0.0
    %198 = vmatmul.mubr.f32.gmra.mrb[0].mxu0 %v105
    %v199 = vpop.f32.mrb[0].mxu0
    %v200 = vadd.f32 0.0, %v199
    %v201 = vpop.f32.mrb[0].mxu0
    %202 = vmatprep.mubr.f32.mxu0 0.0
    %203 = vmatmul.mubr.f32.gmra.mrb[0].mxu0 %v106
    %v204 = vpop.f32.mrb[0].mxu0
    %v205 = vadd.f32 0.0, %v204
    %v206 = vpop.f32.mrb[0].mxu0
    %207 = vmatprep.mubr.f32.mxu0 0.0
    %208 = vmatmul.mubr.f32.gmra.mrb[0].mxu0 %v107
    %v209 = vpop.f32.mrb[0].mxu0
    %v210 = vadd.f32 0.0, %v209
    %v211 = vpop.f32.mrb[0].mxu0
    %212 = vmatprep.mubr.f32.mxu0 0.0
    %213 = vmatmul.mubr.f32.gmra.mrb[0].mxu0 %v108
    %v214 = vpop.f32.mrb[0].mxu0
    %v215 = vadd.f32 0.0, %v214
    %v216 = vpop.f32.mrb[0].mxu0
    %217 = vmatprep.mubr.f32.mxu0 0.0
    %218 = vmatmul.mubr.f32.gmra.mrb[0].mxu0 %v109
    %v219 = vpop.f32.mrb[0].mxu0
    %v220 = vadd.f32 0.0, %v219
    %v221 = vpop.f32.mrb[0].mxu0
    %222 = vmatprep.mubr.f32.mxu0 0.0
    %223 = vmatmul.mubr.f32.gmra.mrb[0].mxu0 %v110
    %v224 = vpop.f32.mrb[0].mxu0
    %v225 = vadd.f32 0.0, %v224
    %v226 = vpop.f32.mrb[0].mxu0
    %227 = vmatprep.mubr.f32.mxu0 0.0
    %228 = vmatmul.mubr.f32.gmra.mrb[0].mxu0 %v111
    %v229 = vpop.f32.mrb[0].mxu0
    %v230 = vadd.f32 0.0, %v229
    %v231 = vpop.f32.mrb[0].mxu0
    %232 = vdwg.mxu0
    %233 = vst [vmem:[#allocation2] sm:$0xff] %v195
    %234 = vst [vmem:[#allocation2 + $0x8] sm:$0xff] %v200
    %235 = vst [vmem:[#allocation2 + $0x10] sm:$0xff] %v205
    %236 = vst [vmem:[#allocation2 + $0x18] sm:$0xff] %v210
    %237 = vst [vmem:[#allocation2 + $0x20] sm:$0xff] %v215
    %238 = vst [vmem:[#allocation2 + $0x28] sm:$0xff] %v220
    %239 = vst [vmem:[#allocation2 + $0x30] sm:$0xff] %v225
    %240 = vst [vmem:[#allocation2 + $0x38] sm:$0xff] %v230
    %v241 = vld [vmem:[#allocation6] sm:$0xff]
    %v242 = vld [vmem:[#allocation6 + $0x8] sm:$0xff]
    %v243 = vld [vmem:[#allocation6 + $0x10] sm:$0xff]
    %v244 = vld [vmem:[#allocation6 + $0x18] sm:$0xff]
    %v245 = vld [vmem:[#allocation6 + $0x20] sm:$0xff]
    %v246 = vld [vmem:[#allocation6 + $0x28] sm:$0xff]
    %v247 = vld [vmem:[#allocation6 + $0x30] sm:$0xff]
    %v248 = vld [vmem:[#allocation6 + $0x38] sm:$0xff]
    %v249 = vld [vmem:[#allocation6 + $0x40] sm:$0xff]
    %v250 = vld [vmem:[#allocation6 + $0x48] sm:$0xff]
    %v251 = vld [vmem:[#allocation6 + $0x50] sm:$0xff]
    %v252 = vld [vmem:[#allocation6 + $0x58] sm:$0xff]
    %v253 = vld [vmem:[#allocation6 + $0x60] sm:$0xff]
    %v254 = vld [vmem:[#allocation6 + $0x68] sm:$0xff]
    %v255 = vld [vmem:[#allocation6 + $0x70] sm:$0xff]
    %v256 = vld [vmem:[#allocation6 + $0x78] sm:$0xff]
    %v257 = vld [vmem:[#allocation2] sm:$0xff]
    %258 = vmatprep.subr.mxu0 0.0
    %259 = vmatpush1.msra.mxu0 %v241
    %260 = vmatprep.subr.mxu0 0.0
    %261 = vmatpush1.msra.mxu0 %v242
    %262 = vmatprep.subr.mxu0 0.0
    %263 = vmatpush1.msra.mxu0 %v243
    %264 = vmatprep.subr.mxu0 0.0
    %265 = vmatpush1.msra.mxu0 %v244
    %266 = vmatprep.subr.mxu0 0.0
    %267 = vmatpush1.msra.mxu0 %v245
    %268 = vmatprep.subr.mxu0 0.0
    %269 = vmatpush1.msra.mxu0 %v246
    %270 = vmatprep.subr.mxu0 0.0
    %271 = vmatpush1.msra.mxu0 %v247
    %272 = vmatprep.subr.mxu0 0.0
    %273 = vmatpush1.msra.mxu0 %v248
    %274 = vmatprep.subr.mxu0 0.0
    %275 = vmatpush1.msra.mxu0 %v249
    %276 = vmatprep.subr.mxu0 0.0
    %277 = vmatpush1.msra.mxu0 %v250
    %278 = vmatprep.subr.mxu0 0.0
    %279 = vmatpush1.msra.mxu0 %v251
    %280 = vmatprep.subr.mxu0 0.0
    %281 = vmatpush1.msra.mxu0 %v252
    %282 = vmatprep.subr.mxu0 0.0
    %283 = vmatpush1.msra.mxu0 %v253
    %284 = vmatprep.subr.mxu0 0.0
    %285 = vmatpush1.msra.mxu0 %v254
    %286 = vmatprep.subr.mxu0 0.0
    %287 = vmatpush1.msra.mxu0 %v255
    %288 = vmatprep.subr.mxu0 0.0
    %289 = vmatpush1.msra.mxu0 %v256
    %290 = vmatprep.subr.mxu0 0.0
    %291 = vmatpush1.msra.mxu0 0.0
    %292 = vmatprep.subr.mxu0 0.0
    %293 = vmatpush1.msra.mxu0 0.0
    %294 = vmatprep.subr.mxu0 0.0
    %295 = vmatpush1.msra.mxu0 0.0
    %296 = vmatprep.subr.mxu0 0.0
    %297 = vmatpush1.msra.mxu0 0.0
    %298 = vmatprep.subr.mxu0 0.0
    %299 = vmatpush1.msra.mxu0 0.0
    %300 = vmatprep.subr.mxu0 0.0
    %301 = vmatpush1.msra.mxu0 0.0
    %302 = vmatprep.subr.mxu0 0.0
    %303 = vmatpush1.msra.mxu0 0.0
    %304 = vmatprep.subr.mxu0 0.0
    %305 = vmatpush1.msra.mxu0 0.0
    %306 = vmatprep.subr.mxu0 0.0
    %307 = vmatpush1.msra.mxu0 0.0
    %308 = vmatprep.subr.mxu0 0.0
    %309 = vmatpush1.msra.mxu0 0.0
    %310 = vmatprep.subr.mxu0 0.0
    %311 = vmatpush1.msra.mxu0 0.0
    %312 = vmatprep.subr.mxu0 0.0
    %313 = vmatpush1.msra.mxu0 0.0
    %314 = vmatprep.subr.mxu0 0.0
    %315 = vmatpush1.msra.mxu0 0.0
    %316 = vmatprep.subr.mxu0 0.0
    %317 = vmatpush1.msra.mxu0 0.0
    %318 = vmatprep.subr.mxu0 0.0
    %319 = vmatpush1.msra.mxu0 0.0
    %320 = vmatprep.subr.mxu0 0.0
    %321 = vmatpush1.msra.mxu0 0.0
    %322 = vmatprep.mubr.f32.mxu0 0.0
    %323 = vmatmul.mubr.f32.gmra.mrb[0].mxu0 0.0
    %v324 = vpop.f32.mrb[0].mxu0
    %v325 = vadd.f32 0.0, %v324
    %v326 = vpop.f32.mrb[0].mxu0
    %327 = vdwg.mxu0
    %v328 = vadd.f32 %v257, %v325
    %v329 = vtanh.pop %v328
    %s330 = scalar_lea.vmem [#allocation2], 8
    %v331 = vld [vmem:[%s330] sm:$0xff]
    %332 = vmatprep.subr.mxu0 0.0
    %333 = vmatpush1.msra.mxu0 %v241
    %334 = vmatprep.subr.mxu0 0.0
    %335 = vmatpush1.msra.mxu0 %v242
    %336 = vmatprep.subr.mxu0 0.0
    %337 = vmatpush1.msra.mxu0 %v243
    %338 = vmatprep.subr.mxu0 0.0
    %339 = vmatpush1.msra.mxu0 %v244
    %340 = vmatprep.subr.mxu0 0.0
    %341 = vmatpush1.msra.mxu0 %v245
    %342 = vmatprep.subr.mxu0 0.0
    %343 = vmatpush1.msra.mxu0 %v246
    %344 = vmatprep.subr.mxu0 0.0
    %345 = vmatpush1.msra.mxu0 %v247
    %346 = vmatprep.subr.mxu0 0.0
    %347 = vmatpush1.msra.mxu0 %v248
    %348 = vmatprep.subr.mxu0 0.0
    %349 = vmatpush1.msra.mxu0 %v249
    %350 = vmatprep.subr.mxu0 0.0
    %351 = vmatpush1.msra.mxu0 %v250
    %352 = vmatprep.subr.mxu0 0.0
    %353 = vmatpush1.msra.mxu0 %v251
    %354 = vmatprep.subr.mxu0 0.0
    %355 = vmatpush1.msra.mxu0 %v252
    %356 = vmatprep.subr.mxu0 0.0
    %357 = vmatpush1.msra.mxu0 %v253
    %358 = vmatprep.subr.mxu0 0.0
    %359 = vmatpush1.msra.mxu0 %v254
    %360 = vmatprep.subr.mxu0 0.0
    %361 = vmatpush1.msra.mxu0 %v255
    %362 = vmatprep.subr.mxu0 0.0
    %363 = vmatpush1.msra.mxu0 %v256
    %364 = vmatprep.subr.mxu0 0.0
    %365 = vmatpush1.msra.mxu0 0.0
    %366 = vmatprep.subr.mxu0 0.0
    %367 = vmatpush1.msra.mxu0 0.0
    %368 = vmatprep.subr.mxu0 0.0
    %369 = vmatpush1.msra.mxu0 0.0
    %370 = vmatprep.subr.mxu0 0.0
    %371 = vmatpush1.msra.mxu0 0.0
    %372 = vmatprep.subr.mxu0 0.0
    %373 = vmatpush1.msra.mxu0 0.0
    %374 = vmatprep.subr.mxu0 0.0
    %375 = vmatpush1.msra.mxu0 0.0
    %376 = vmatprep.subr.mxu0 0.0
    %377 = vmatpush1.msra.mxu0 0.0
    %378 = vmatprep.subr.mxu0 0.0
    %379 = vmatpush1.msra.mxu0 0.0
    %380 = vmatprep.subr.mxu0 0.0
    %381 = vmatpush1.msra.mxu0 0.0
    %382 = vmatprep.subr.mxu0 0.0
    %383 = vmatpush1.msra.mxu0 0.0
    %384 = vmatprep.subr.mxu0 0.0
    %385 = vmatpush1.msra.mxu0 0.0
    %386 = vmatprep.subr.mxu0 0.0
    %387 = vmatpush1.msra.mxu0 0.0
    %388 = vmatprep.subr.mxu0 0.0
    %389 = vmatpush1.msra.mxu0 0.0
    %390 = vmatprep.subr.mxu0 0.0
    %391 = vmatpush1.msra.mxu0 0.0
    %392 = vmatprep.subr.mxu0 0.0
    %393 = vmatpush1.msra.mxu0 0.0
    %394 = vmatprep.subr.mxu0 0.0
    %395 = vmatpush1.msra.mxu0 0.0
    %396 = vmatprep.mubr.f32.mxu0 0.0
    %397 = vmatmul.mubr.f32.gmra.mrb[0].mxu0 %v329
    %v398 = vpop.f32.mrb[0].mxu0
    %v399 = vadd.f32 0.0, %v398
    %v400 = vpop.f32.mrb[0].mxu0
    %401 = vdwg.mxu0
    %v402 = vadd.f32 %v331, %v399
    %v403 = vtanh.pop %v402
    %s404 = scalar_lea.vmem [#allocation2], 16
    %v405 = vld [vmem:[%s404] sm:$0xff]
    %406 = vmatprep.subr.mxu0 0.0
    %407 = vmatpush1.msra.mxu0 %v241
    %408 = vmatprep.subr.mxu0 0.0
    %409 = vmatpush1.msra.mxu0 %v242
    %410 = vmatprep.subr.mxu0 0.0
    %411 = vmatpush1.msra.mxu0 %v243
    %412 = vmatprep.subr.mxu0 0.0
    %413 = vmatpush1.msra.mxu0 %v244
    %414 = vmatprep.subr.mxu0 0.0
    %415 = vmatpush1.msra.mxu0 %v245
    %416 = vmatprep.subr.mxu0 0.0
    %417 = vmatpush1.msra.mxu0 %v246
    %418 = vmatprep.subr.mxu0 0.0
    %419 = vmatpush1.msra.mxu0 %v247
    %420 = vmatprep.subr.mxu0 0.0
    %421 = vmatpush1.msra.mxu0 %v248
    %422 = vmatprep.subr.mxu0 0.0
    %423 = vmatpush1.msra.mxu0 %v249
    %424 = vmatprep.subr.mxu0 0.0
    %425 = vmatpush1.msra.mxu0 %v250
    %426 = vmatprep.subr.mxu0 0.0
    %427 = vmatpush1.msra.mxu0 %v251
    %428 = vmatprep.subr.mxu0 0.0
    %429 = vmatpush1.msra.mxu0 %v252
    %430 = vmatprep.subr.mxu0 0.0
    %431 = vmatpush1.msra.mxu0 %v253
    %432 = vmatprep.subr.mxu0 0.0
    %433 = vmatpush1.msra.mxu0 %v254
    %434 = vmatprep.subr.mxu0 0.0
    %435 = vmatpush1.msra.mxu0 %v255
    %436 = vmatprep.subr.mxu0 0.0
    %437 = vmatpush1.msra.mxu0 %v256
    %438 = vmatprep.subr.mxu0 0.0
    %439 = vmatpush1.msra.mxu0 0.0
    %440 = vmatprep.subr.mxu0 0.0
    %441 = vmatpush1.msra.mxu0 0.0
    %442 = vmatprep.subr.mxu0 0.0
    %443 = vmatpush1.msra.mxu0 0.0
    %444 = vmatprep.subr.mxu0 0.0
    %445 = vmatpush1.msra.mxu0 0.0
    %446 = vmatprep.subr.mxu0 0.0
    %447 = vmatpush1.msra.mxu0 0.0
    %448 = vmatprep.subr.mxu0 0.0
    %449 = vmatpush1.msra.mxu0 0.0
    %450 = vmatprep.subr.mxu0 0.0
    %451 = vmatpush1.msra.mxu0 0.0
    %452 = vmatprep.subr.mxu0 0.0
    %453 = vmatpush1.msra.mxu0 0.0
    %454 = vmatprep.subr.mxu0 0.0
    %455 = vmatpush1.msra.mxu0 0.0
    %456 = vmatprep.subr.mxu0 0.0
    %457 = vmatpush1.msra.mxu0 0.0
    %458 = vmatprep.subr.mxu0 0.0
    %459 = vmatpush1.msra.mxu0 0.0
    %460 = vmatprep.subr.mxu0 0.0
    %461 = vmatpush1.msra.mxu0 0.0
    %462 = vmatprep.subr.mxu0 0.0
    %463 = vmatpush1.msra.mxu0 0.0
    %464 = vmatprep.subr.mxu0 0.0
    %465 = vmatpush1.msra.mxu0 0.0
    %466 = vmatprep.subr.mxu0 0.0
    %467 = vmatpush1.msra.mxu0 0.0
    %468 = vmatprep.subr.mxu0 0.0
    %469 = vmatpush1.msra.mxu0 0.0
    %470 = vmatprep.mubr.f32.mxu0 0.0
    %471 = vmatmul.mubr.f32.gmra.mrb[0].mxu0 %v403
    %v472 = vpop.f32.mrb[0].mxu0
    %v473 = vadd.f32 0.0, %v472
    %v474 = vpop.f32.mrb[0].mxu0
    %475 = vdwg.mxu0
    %v476 = vadd.f32 %v405, %v473
    %v477 = vtanh.pop %v476
    %s478 = scalar_lea.vmem [#allocation2], 24
    %v479 = vld [vmem:[%s478] sm:$0xff]
    %480 = vmatprep.subr.mxu0 0.0
    %481 = vmatpush1.msra.mxu0 %v241
    %482 = vmatprep.subr.mxu0 0.0
    %483 = vmatpush1.msra.mxu0 %v242
    %484 = vmatprep.subr.mxu0 0.0
    %485 = vmatpush1.msra.mxu0 %v243
    %486 = vmatprep.subr.mxu0 0.0
    %487 = vmatpush1.msra.mxu0 %v244
    %488 = vmatprep.subr.mxu0 0.0
    %489 = vmatpush1.msra.mxu0 %v245
    %490 = vmatprep.subr.mxu0 0.0
    %491 = vmatpush1.msra.mxu0 %v246
    %492 = vmatprep.subr.mxu0 0.0
    %493 = vmatpush1.msra.mxu0 %v247
    %494 = vmatprep.subr.mxu0 0.0
    %495 = vmatpush1.msra.mxu0 %v248
    %496 = vmatprep.subr.mxu0 0.0
    %497 = vmatpush1.msra.mxu0 %v249
    %498 = vmatprep.subr.mxu0 0.0
    %499 = vmatpush1.msra.mxu0 %v250
    %500 = vmatprep.subr.mxu0 0.0
    %501 = vmatpush1.msra.mxu0 %v251
    %502 = vmatprep.subr.mxu0 0.0
    %503 = vmatpush1.msra.mxu0 %v252
    %504 = vmatprep.subr.mxu0 0.0
    %505 = vmatpush1.msra.mxu0 %v253
    %506 = vmatprep.subr.mxu0 0.0
    %507 = vmatpush1.msra.mxu0 %v254
    %508 = vmatprep.subr.mxu0 0.0
    %509 = vmatpush1.msra.mxu0 %v255
    %510 = vmatprep.subr.mxu0 0.0
    %511 = vmatpush1.msra.mxu0 %v256
    %512 = vmatprep.subr.mxu0 0.0
    %513 = vmatpush1.msra.mxu0 0.0
    %514 = vmatprep.subr.mxu0 0.0
    %515 = vmatpush1.msra.mxu0 0.0
    %516 = vmatprep.subr.mxu0 0.0
    %517 = vmatpush1.msra.mxu0 0.0
    %518 = vmatprep.subr.mxu0 0.0
    %519 = vmatpush1.msra.mxu0 0.0
    %520 = vmatprep.subr.mxu0 0.0
    %521 = vmatpush1.msra.mxu0 0.0
    %522 = vmatprep.subr.mxu0 0.0
    %523 = vmatpush1.msra.mxu0 0.0
    %524 = vmatprep.subr.mxu0 0.0
    %525 = vmatpush1.msra.mxu0 0.0
    %526 = vmatprep.subr.mxu0 0.0
    %527 = vmatpush1.msra.mxu0 0.0
    %528 = vmatprep.subr.mxu0 0.0
    %529 = vmatpush1.msra.mxu0 0.0
    %530 = vmatprep.subr.mxu0 0.0
    %531 = vmatpush1.msra.mxu0 0.0
    %532 = vmatprep.subr.mxu0 0.0
    %533 = vmatpush1.msra.mxu0 0.0
    %534 = vmatprep.subr.mxu0 0.0
    %535 = vmatpush1.msra.mxu0 0.0
    %536 = vmatprep.subr.mxu0 0.0
    %537 = vmatpush1.msra.mxu0 0.0
    %538 = vmatprep.subr.mxu0 0.0
    %539 = vmatpush1.msra.mxu0 0.0
    %540 = vmatprep.subr.mxu0 0.0
    %541 = vmatpush1.msra.mxu0 0.0
    %542 = vmatprep.subr.mxu0 0.0
    %543 = vmatpush1.msra.mxu0 0.0
    %544 = vmatprep.mubr.f32.mxu0 0.0
    %545 = vmatmul.mubr.f32.gmra.mrb[0].mxu0 %v477
    %v546 = vpop.f32.mrb[0].mxu0
    %v547 = vadd.f32 0.0, %v546
    %v548 = vpop.f32.mrb[0].mxu0
    %549 = vdwg.mxu0
    %v550 = vadd.f32 %v479, %v547
    %v551 = vtanh.pop %v550
    %s552 = scalar_lea.vmem [#allocation2], 32
    %v553 = vld [vmem:[%s552] sm:$0xff]
    %554 = vmatprep.subr.mxu0 0.0
    %555 = vmatpush1.msra.mxu0 %v241
    %556 = vmatprep.subr.mxu0 0.0
    %557 = vmatpush1.msra.mxu0 %v242
    %558 = vmatprep.subr.mxu0 0.0
    %559 = vmatpush1.msra.mxu0 %v243
    %560 = vmatprep.subr.mxu0 0.0
    %561 = vmatpush1.msra.mxu0 %v244
    %562 = vmatprep.subr.mxu0 0.0
    %563 = vmatpush1.msra.mxu0 %v245
    %564 = vmatprep.subr.mxu0 0.0
    %565 = vmatpush1.msra.mxu0 %v246
    %566 = vmatprep.subr.mxu0 0.0
    %567 = vmatpush1.msra.mxu0 %v247
    %568 = vmatprep.subr.mxu0 0.0
    %569 = vmatpush1.msra.mxu0 %v248
    %570 = vmatprep.subr.mxu0 0.0
    %571 = vmatpush1.msra.mxu0 %v249
    %572 = vmatprep.subr.mxu0 0.0
    %573 = vmatpush1.msra.mxu0 %v250
    %574 = vmatprep.subr.mxu0 0.0
    %575 = vmatpush1.msra.mxu0 %v251
    %576 = vmatprep.subr.mxu0 0.0
    %577 = vmatpush1.msra.mxu0 %v252
    %578 = vmatprep.subr.mxu0 0.0
    %579 = vmatpush1.msra.mxu0 %v253
    %580 = vmatprep.subr.mxu0 0.0
    %581 = vmatpush1.msra.mxu0 %v254
    %582 = vmatprep.subr.mxu0 0.0
    %583 = vmatpush1.msra.mxu0 %v255
    %584 = vmatprep.subr.mxu0 0.0
    %585 = vmatpush1.msra.mxu0 %v256
    %586 = vmatprep.subr.mxu0 0.0
    %587 = vmatpush1.msra.mxu0 0.0
    %588 = vmatprep.subr.mxu0 0.0
    %589 = vmatpush1.msra.mxu0 0.0
    %590 = vmatprep.subr.mxu0 0.0
    %591 = vmatpush1.msra.mxu0 0.0
    %592 = vmatprep.subr.mxu0 0.0
    %593 = vmatpush1.msra.mxu0 0.0
    %594 = vmatprep.subr.mxu0 0.0
    %595 = vmatpush1.msra.mxu0 0.0
    %596 = vmatprep.subr.mxu0 0.0
    %597 = vmatpush1.msra.mxu0 0.0
    %598 = vmatprep.subr.mxu0 0.0
    %599 = vmatpush1.msra.mxu0 0.0
    %600 = vmatprep.subr.mxu0 0.0
    %601 = vmatpush1.msra.mxu0 0.0
    %602 = vmatprep.subr.mxu0 0.0
    %603 = vmatpush1.msra.mxu0 0.0
    %604 = vmatprep.subr.mxu0 0.0
    %605 = vmatpush1.msra.mxu0 0.0
    %606 = vmatprep.subr.mxu0 0.0
    %607 = vmatpush1.msra.mxu0 0.0
    %608 = vmatprep.subr.mxu0 0.0
    %609 = vmatpush1.msra.mxu0 0.0
    %610 = vmatprep.subr.mxu0 0.0
    %611 = vmatpush1.msra.mxu0 0.0
    %612 = vmatprep.subr.mxu0 0.0
    %613 = vmatpush1.msra.mxu0 0.0
    %614 = vmatprep.subr.mxu0 0.0
    %615 = vmatpush1.msra.mxu0 0.0
    %616 = vmatprep.subr.mxu0 0.0
    %617 = vmatpush1.msra.mxu0 0.0
    %618 = vmatprep.mubr.f32.mxu0 0.0
    %619 = vmatmul.mubr.f32.gmra.mrb[0].mxu0 %v551
    %v620 = vpop.f32.mrb[0].mxu0
    %v621 = vadd.f32 0.0, %v620
    %v622 = vpop.f32.mrb[0].mxu0
    %623 = vdwg.mxu0
    %v624 = vadd.f32 %v553, %v621
    %v625 = vtanh.pop %v624
    %s626 = scalar_lea.vmem [#allocation2], 40
    %v627 = vld [vmem:[%s626] sm:$0xff]
    %628 = vmatprep.subr.mxu0 0.0
    %629 = vmatpush1.msra.mxu0 %v241
    %630 = vmatprep.subr.mxu0 0.0
    %631 = vmatpush1.msra.mxu0 %v242
    %632 = vmatprep.subr.mxu0 0.0
    %633 = vmatpush1.msra.mxu0 %v243
    %634 = vmatprep.subr.mxu0 0.0
    %635 = vmatpush1.msra.mxu0 %v244
    %636 = vmatprep.subr.mxu0 0.0
    %637 = vmatpush1.msra.mxu0 %v245
    %638 = vmatprep.subr.mxu0 0.0
    %639 = vmatpush1.msra.mxu0 %v246
    %640 = vmatprep.subr.mxu0 0.0
    %641 = vmatpush1.msra.mxu0 %v247
    %642 = vmatprep.subr.mxu0 0.0
    %643 = vmatpush1.msra.mxu0 %v248
    %644 = vmatprep.subr.mxu0 0.0
    %645 = vmatpush1.msra.mxu0 %v249
    %646 = vmatprep.subr.mxu0 0.0
    %647 = vmatpush1.msra.mxu0 %v250
    %648 = vmatprep.subr.mxu0 0.0
    %649 = vmatpush1.msra.mxu0 %v251
    %650 = vmatprep.subr.mxu0 0.0
    %651 = vmatpush1.msra.mxu0 %v252
    %652 = vmatprep.subr.mxu0 0.0
    %653 = vmatpush1.msra.mxu0 %v253
    %654 = vmatprep.subr.mxu0 0.0
    %655 = vmatpush1.msra.mxu0 %v254
    %656 = vmatprep.subr.mxu0 0.0
    %657 = vmatpush1.msra.mxu0 %v255
    %658 = vmatprep.subr.mxu0 0.0
    %659 = vmatpush1.msra.mxu0 %v256
    %660 = vmatprep.subr.mxu0 0.0
    %661 = vmatpush1.msra.mxu0 0.0
    %662 = vmatprep.subr.mxu0 0.0
    %663 = vmatpush1.msra.mxu0 0.0
    %664 = vmatprep.subr.mxu0 0.0
    %665 = vmatpush1.msra.mxu0 0.0
    %666 = vmatprep.subr.mxu0 0.0
    %667 = vmatpush1.msra.mxu0 0.0
    %668 = vmatprep.subr.mxu0 0.0
    %669 = vmatpush1.msra.mxu0 0.0
    %670 = vmatprep.subr.mxu0 0.0
    %671 = vmatpush1.msra.mxu0 0.0
    %672 = vmatprep.subr.mxu0 0.0
    %673 = vmatpush1.msra.mxu0 0.0
    %674 = vmatprep.subr.mxu0 0.0
    %675 = vmatpush1.msra.mxu0 0.0
    %676 = vmatprep.subr.mxu0 0.0
    %677 = vmatpush1.msra.mxu0 0.0
    %678 = vmatprep.subr.mxu0 0.0
    %679 = vmatpush1.msra.mxu0 0.0
    %680 = vmatprep.subr.mxu0 0.0
    %681 = vmatpush1.msra.mxu0 0.0
    %682 = vmatprep.subr.mxu0 0.0
    %683 = vmatpush1.msra.mxu0 0.0
    %684 = vmatprep.subr.mxu0 0.0
    %685 = vmatpush1.msra.mxu0 0.0
    %686 = vmatprep.subr.mxu0 0.0
    %687 = vmatpush1.msra.mxu0 0.0
    %688 = vmatprep.subr.mxu0 0.0
    %689 = vmatpush1.msra.mxu0 0.0
    %690 = vmatprep.subr.mxu0 0.0
    %691 = vmatpush1.msra.mxu0 0.0
    %692 = vmatprep.mubr.f32.mxu0 0.0
    %693 = vmatmul.mubr.f32.gmra.mrb[0].mxu0 %v625
    %v694 = vpop.f32.mrb[0].mxu0
    %v695 = vadd.f32 0.0, %v694
    %v696 = vpop.f32.mrb[0].mxu0
    %697 = vdwg.mxu0
    %v698 = vadd.f32 %v627, %v695
    %v699 = vtanh.pop %v698
    %s700 = scalar_lea.vmem [#allocation2], 48
    %v701 = vld [vmem:[%s700] sm:$0xff]
    %702 = vmatprep.subr.mxu0 0.0
    %703 = vmatpush1.msra.mxu0 %v241
    %704 = vmatprep.subr.mxu0 0.0
    %705 = vmatpush1.msra.mxu0 %v242
    %706 = vmatprep.subr.mxu0 0.0
    %707 = vmatpush1.msra.mxu0 %v243
    %708 = vmatprep.subr.mxu0 0.0
    %709 = vmatpush1.msra.mxu0 %v244
    %710 = vmatprep.subr.mxu0 0.0
    %711 = vmatpush1.msra.mxu0 %v245
    %712 = vmatprep.subr.mxu0 0.0
    %713 = vmatpush1.msra.mxu0 %v246
    %714 = vmatprep.subr.mxu0 0.0
    %715 = vmatpush1.msra.mxu0 %v247
    %716 = vmatprep.subr.mxu0 0.0
    %717 = vmatpush1.msra.mxu0 %v248
    %718 = vmatprep.subr.mxu0 0.0
    %719 = vmatpush1.msra.mxu0 %v249
    %720 = vmatprep.subr.mxu0 0.0
    %721 = vmatpush1.msra.mxu0 %v250
    %722 = vmatprep.subr.mxu0 0.0
    %723 = vmatpush1.msra.mxu0 %v251
    %724 = vmatprep.subr.mxu0 0.0
    %725 = vmatpush1.msra.mxu0 %v252
    %726 = vmatprep.subr.mxu0 0.0
    %727 = vmatpush1.msra.mxu0 %v253
    %728 = vmatprep.subr.mxu0 0.0
    %729 = vmatpush1.msra.mxu0 %v254
    %730 = vmatprep.subr.mxu0 0.0
    %731 = vmatpush1.msra.mxu0 %v255
    %732 = vmatprep.subr.mxu0 0.0
    %733 = vmatpush1.msra.mxu0 %v256
    %734 = vmatprep.subr.mxu0 0.0
    %735 = vmatpush1.msra.mxu0 0.0
    %736 = vmatprep.subr.mxu0 0.0
    %737 = vmatpush1.msra.mxu0 0.0
    %738 = vmatprep.subr.mxu0 0.0
    %739 = vmatpush1.msra.mxu0 0.0
    %740 = vmatprep.subr.mxu0 0.0
    %741 = vmatpush1.msra.mxu0 0.0
    %742 = vmatprep.subr.mxu0 0.0
    %743 = vmatpush1.msra.mxu0 0.0
    %744 = vmatprep.subr.mxu0 0.0
    %745 = vmatpush1.msra.mxu0 0.0
    %746 = vmatprep.subr.mxu0 0.0
    %747 = vmatpush1.msra.mxu0 0.0
    %748 = vmatprep.subr.mxu0 0.0
    %749 = vmatpush1.msra.mxu0 0.0
    %750 = vmatprep.subr.mxu0 0.0
    %751 = vmatpush1.msra.mxu0 0.0
    %752 = vmatprep.subr.mxu0 0.0
    %753 = vmatpush1.msra.mxu0 0.0
    %754 = vmatprep.subr.mxu0 0.0
    %755 = vmatpush1.msra.mxu0 0.0
    %756 = vmatprep.subr.mxu0 0.0
    %757 = vmatpush1.msra.mxu0 0.0
    %758 = vmatprep.subr.mxu0 0.0
    %759 = vmatpush1.msra.mxu0 0.0
    %760 = vmatprep.subr.mxu0 0.0
    %761 = vmatpush1.msra.mxu0 0.0
    %762 = vmatprep.subr.mxu0 0.0
    %763 = vmatpush1.msra.mxu0 0.0
    %764 = vmatprep.subr.mxu0 0.0
    %765 = vmatpush1.msra.mxu0 0.0
    %766 = vmatprep.mubr.f32.mxu0 0.0
    %767 = vmatmul.mubr.f32.gmra.mrb[0].mxu0 %v699
    %v768 = vpop.f32.mrb[0].mxu0
    %v769 = vadd.f32 0.0, %v768
    %v770 = vpop.f32.mrb[0].mxu0
    %771 = vdwg.mxu0
    %v772 = vadd.f32 %v701, %v769
    %v773 = vtanh.pop %v772
    %s774 = scalar_lea.vmem [#allocation2], 56
    %v775 = vld [vmem:[%s774] sm:$0xff]
    %776 = vmatprep.subr.mxu0 0.0
    %777 = vmatpush1.msra.mxu0 %v241
    %778 = vmatprep.subr.mxu0 0.0
    %779 = vmatpush1.msra.mxu0 %v242
    %780 = vmatprep.subr.mxu0 0.0
    %781 = vmatpush1.msra.mxu0 %v243
    %782 = vmatprep.subr.mxu0 0.0
    %783 = vmatpush1.msra.mxu0 %v244
    %784 = vmatprep.subr.mxu0 0.0
    %785 = vmatpush1.msra.mxu0 %v245
    %786 = vmatprep.subr.mxu0 0.0
    %787 = vmatpush1.msra.mxu0 %v246
    %788 = vmatprep.subr.mxu0 0.0
    %789 = vmatpush1.msra.mxu0 %v247
    %790 = vmatprep.subr.mxu0 0.0
    %791 = vmatpush1.msra.mxu0 %v248
    %792 = vmatprep.subr.mxu0 0.0
    %793 = vmatpush1.msra.mxu0 %v249
    %794 = vmatprep.subr.mxu0 0.0
    %795 = vmatpush1.msra.mxu0 %v250
    %796 = vmatprep.subr.mxu0 0.0
    %797 = vmatpush1.msra.mxu0 %v251
    %798 = vmatprep.subr.mxu0 0.0
    %799 = vmatpush1.msra.mxu0 %v252
    %800 = vmatprep.subr.mxu0 0.0
    %801 = vmatpush1.msra.mxu0 %v253
    %802 = vmatprep.subr.mxu0 0.0
    %803 = vmatpush1.msra.mxu0 %v254
    %804 = vmatprep.subr.mxu0 0.0
    %805 = vmatpush1.msra.mxu0 %v255
    %806 = vmatprep.subr.mxu0 0.0
    %807 = vmatpush1.msra.mxu0 %v256
    %808 = vmatprep.subr.mxu0 0.0
    %809 = vmatpush1.msra.mxu0 0.0
    %810 = vmatprep.subr.mxu0 0.0
    %811 = vmatpush1.msra.mxu0 0.0
    %812 = vmatprep.subr.mxu0 0.0
    %813 = vmatpush1.msra.mxu0 0.0
    %814 = vmatprep.subr.mxu0 0.0
    %815 = vmatpush1.msra.mxu0 0.0
    %816 = vmatprep.subr.mxu0 0.0
    %817 = vmatpush1.msra.mxu0 0.0
    %818 = vmatprep.subr.mxu0 0.0
    %819 = vmatpush1.msra.mxu0 0.0
    %820 = vmatprep.subr.mxu0 0.0
    %821 = vmatpush1.msra.mxu0 0.0
    %822 = vmatprep.subr.mxu0 0.0
    %823 = vmatpush1.msra.mxu0 0.0
    %824 = vmatprep.subr.mxu0 0.0
    %825 = vmatpush1.msra.mxu0 0.0
    %826 = vmatprep.subr.mxu0 0.0
    %827 = vmatpush1.msra.mxu0 0.0
    %828 = vmatprep.subr.mxu0 0.0
    %829 = vmatpush1.msra.mxu0 0.0
    %830 = vmatprep.subr.mxu0 0.0
    %831 = vmatpush1.msra.mxu0 0.0
    %832 = vmatprep.subr.mxu0 0.0
    %833 = vmatpush1.msra.mxu0 0.0
    %834 = vmatprep.subr.mxu0 0.0
    %835 = vmatpush1.msra.mxu0 0.0
    %836 = vmatprep.subr.mxu0 0.0
    %837 = vmatpush1.msra.mxu0 0.0
    %838 = vmatprep.subr.mxu0 0.0
    %839 = vmatpush1.msra.mxu0 0.0
    %840 = vmatprep.mubr.f32.mxu0 0.0
    %841 = vmatmul.mubr.f32.gmra.mrb[0].mxu0 %v773
    %v842 = vpop.f32.mrb[0].mxu0
    %v843 = vadd.f32 0.0, %v842
    %v844 = vpop.f32.mrb[0].mxu0
    %845 = vdwg.mxu0
    %v846 = vadd.f32 %v775, %v843
    %v847 = vtanh.pop %v846
    %v848 = vld [vmem:[#allocation8] sm:$0xff]
    %v849 = vld [vmem:[#allocation8 + $0x8] sm:$0xff]
    %v850 = vld [vmem:[#allocation8 + $0x10] sm:$0xff]
    %v851 = vld [vmem:[#allocation8 + $0x18] sm:$0xff]
    %v852 = vld [vmem:[#allocation8 + $0x20] sm:$0xff]
    %v853 = vld [vmem:[#allocation8 + $0x28] sm:$0xff]
    %v854 = vld [vmem:[#allocation8 + $0x30] sm:$0xff]
    %v855 = vld [vmem:[#allocation8 + $0x38] sm:$0xff]
    %v856 = vld [vmem:[#allocation8 + $0x40] sm:$0xff]
    %v857 = vld [vmem:[#allocation8 + $0x48] sm:$0xff]
    %v858 = vld [vmem:[#allocation8 + $0x50] sm:$0xff]
    %v859 = vld [vmem:[#allocation8 + $0x58] sm:$0xff]
    %v860 = vld [vmem:[#allocation8 + $0x60] sm:$0xff]
    %v861 = vld [vmem:[#allocation8 + $0x68] sm:$0xff]
    %v862 = vld [vmem:[#allocation8 + $0x70] sm:$0xff]
    %v863 = vld [vmem:[#allocation8 + $0x78] sm:$0xff]
    %v864 = vld [vmem:[%s4] sm:$0x1]
    %v866 = vlaneseq
    %v867 = vshrl.u32 %v866, 7
    %v868 = vsub.s32 0, %v867
    %v869 = vrot.slane %v864, %v868
    %871 = vmatprep.subr.mxu0 0.0
    %872 = vmatpush1.msra.mxu0 %v848
    %873 = vmatprep.subr.mxu0 0.0
    %874 = vmatpush1.msra.mxu0 %v849
    %875 = vmatprep.subr.mxu0 0.0
    %876 = vmatpush1.msra.mxu0 %v850
    %877 = vmatprep.subr.mxu0 0.0
    %878 = vmatpush1.msra.mxu0 %v851
    %879 = vmatprep.subr.mxu0 0.0
    %880 = vmatpush1.msra.mxu0 %v852
    %881 = vmatprep.subr.mxu0 0.0
    %882 = vmatpush1.msra.mxu0 %v853
    %883 = vmatprep.subr.mxu0 0.0
    %884 = vmatpush1.msra.mxu0 %v854
    %885 = vmatprep.subr.mxu0 0.0
    %886 = vmatpush1.msra.mxu0 %v855
    %887 = vmatprep.subr.mxu0 0.0
    %888 = vmatpush1.msra.mxu0 %v856
    %889 = vmatprep.subr.mxu0 0.0
    %890 = vmatpush1.msra.mxu0 %v857
    %891 = vmatprep.subr.mxu0 0.0
    %892 = vmatpush1.msra.mxu0 %v858
    %893 = vmatprep.subr.mxu0 0.0
    %894 = vmatpush1.msra.mxu0 %v859
    %895 = vmatprep.subr.mxu0 0.0
    %896 = vmatpush1.msra.mxu0 %v860
    %897 = vmatprep.subr.mxu0 0.0
    %898 = vmatpush1.msra.mxu0 %v861
    %899 = vmatprep.subr.mxu0 0.0
    %900 = vmatpush1.msra.mxu0 %v862
    %901 = vmatprep.subr.mxu0 0.0
    %902 = vmatpush1.msra.mxu0 %v863
    %903 = vmatprep.subr.mxu0 0.0
    %904 = vmatpush1.msra.mxu0 0.0
    %905 = vmatprep.subr.mxu0 0.0
    %906 = vmatpush1.msra.mxu0 0.0
    %907 = vmatprep.subr.mxu0 0.0
    %908 = vmatpush1.msra.mxu0 0.0
    %909 = vmatprep.subr.mxu0 0.0
    %910 = vmatpush1.msra.mxu0 0.0
    %911 = vmatprep.subr.mxu0 0.0
    %912 = vmatpush1.msra.mxu0 0.0
    %913 = vmatprep.subr.mxu0 0.0
    %914 = vmatpush1.msra.mxu0 0.0
    %915 = vmatprep.subr.mxu0 0.0
    %916 = vmatpush1.msra.mxu0 0.0
    %917 = vmatprep.subr.mxu0 0.0
    %918 = vmatpush1.msra.mxu0 0.0
    %919 = vmatprep.subr.mxu0 0.0
    %920 = vmatpush1.msra.mxu0 0.0
    %921 = vmatprep.subr.mxu0 0.0
    %922 = vmatpush1.msra.mxu0 0.0
    %923 = vmatprep.subr.mxu0 0.0
    %924 = vmatpush1.msra.mxu0 0.0
    %925 = vmatprep.subr.mxu0 0.0
    %926 = vmatpush1.msra.mxu0 0.0
    %927 = vmatprep.subr.mxu0 0.0
    %928 = vmatpush1.msra.mxu0 0.0
    %929 = vmatprep.subr.mxu0 0.0
    %930 = vmatpush1.msra.mxu0 0.0
    %931 = vmatprep.subr.mxu0 0.0
    %932 = vmatpush1.msra.mxu0 0.0
    %933 = vmatprep.subr.mxu0 0.0
    %934 = vmatpush1.msra.mxu0 0.0
    %935 = vmatprep.mubr.f32.mxu0 0.0
    %936 = vmatmul.mubr.f32.gmra.mrb[0].mxu0 %v847
    %v937 = vpop.f32.mrb[0].mxu0
    %v938 = vadd.f32 %v869, %v937
    %v939 = vpop.f32.mrb[0].mxu0
    %940 = vdwg.mxu0
    %941 = vst [vmem:[#allocation9] sm:$0xff] %v938
    // Predicated region
    $region34: #{tpu_custom_call.1} parent=1 // pred_check
      _
    $region35: #{tpu_custom_call.1} parent=1 // pred_check_branch
      %943 = sbr.rel (0) target = $region37
    $region36: #{tpu_custom_call.1} parent=1 // pred_region
      %s945 = ssub.s32 128, 128
      %946 = vsyncadd [#allocation5], %s945
      %s948 = sshll.u32 [#allocation9], 4
      %s949 = int_to_ptr.vmem [resolvable:$true] %s948
      %951 = dma.vmem_to_hbm [thread:$0]  %s949, 128, %s5, [#allocation5]
    $region37: #{tpu_custom_call.1} parent=1 // pred_fallthru
      _
    // Predicated region
    $region38: #{tpu_custom_call.1} parent=1 // pred_check
      _
    $region39: #{tpu_custom_call.1} parent=1 // pred_check_branch
      %953 = sbr.rel (0) target = $region41
    $region40: #{tpu_custom_call.1} parent=1 // pred_region
      %954 = dma.done [#allocation5], 128
    $region41: #{tpu_custom_call.1} parent=1 // pred_fallthru
      _
    %955 = vsyncpa [#allocation4], 1
    %956 = vsyncpa [#allocation7], 1
    %957 = vsyncpa [#allocation5], 1

</llo_original>
